<compile_context>
chip_gen: v7x
topology: tpu7x:2x2x1
jax: 0.10.0
libtpu: 0.0.40
codegen_flags: <defaults>
</compile_context>

<pallas_src>
import jax
import jax.numpy as jnp
from jax.experimental import pallas as pl
from jax.experimental.pallas import tpu as pltpu


def gcn_kernel(a_ref, x_ref, w_ref, b_ref, o_ref):
    # a_ref: (TILE_M, T*N)   bf16 row-tile of kron(I_T, A)  (block-diagonal adjacency)
    # x_ref: (T*N, C_in)     bf16 flat (t, n)-major node features (whole slab, resident)
    # w_ref: (C_in, C_out)   bf16 GCN weight
    # b_ref: (1, C_out)      f32 bias
    # o_ref: (TILE_M, C_out) f32 output row-tile (lane-dense)

    # Stage 1 — neighbour aggregation as ONE dense 2D MXU matmul (K = T*N, lane-full).
    agg = jnp.dot(a_ref[...], x_ref[...], preferred_element_type=jnp.float32)

    # Stage 2 — feature transform, dense (TILE_M, C_in) @ (C_in, C_out) MXU matmul.
    out = jnp.dot(
        agg.astype(jnp.bfloat16), w_ref[...], preferred_element_type=jnp.float32
    )

    # Fused f32 bias epilogue (VPU) + single lane-dense store.
    o_ref[...] = (out + b_ref[...]).astype(o_ref.dtype)


def gcn_forward(adjacency, input_feature, num_cnn_feature, weight, bias,
                *, tile_rows=None):
    """Pallas forward matching GCN.forward(adjacency, input_feature, num_cnn_feature)."""
    num_nodes = adjacency.shape[0]
    c_in, c_out = weight.shape
    T = int(num_cnn_feature)
    TN = T * num_nodes

    # Wrapper-side (HBM / XLA) layout work — free relative to the kernel:
    #  - flatten x so the kernel sees the (T*N, C_in) slab directly (no in-kernel reshape)
    #  - build the block-diagonal adjacency kron(I_T, A) once
    #  - cast MXU operands to bf16 (f32 accumulation stays inside the kernel)
    x_flat = input_feature.reshape(TN, c_in).astype(jnp.bfloat16)
    w = weight.astype(jnp.bfloat16)
    b2 = bias.reshape(1, c_out).astype(jnp.float32)
    a_bd = jnp.kron(
        jnp.eye(T, dtype=jnp.float32), adjacency.astype(jnp.float32)
    ).astype(jnp.bfloat16)

    # Row-tile the output so the grid axis can be sharded across TensorCores (v7x).
    if tile_rows is None:
        tile_rows = TN if TN <= 64 else 64
    assert TN % tile_rows == 0 and tile_rows % 8 == 0, (TN, tile_rows)
    grid = (TN // tile_rows,)

    flops = 2 * TN * TN * c_in + 2 * TN * c_in * c_out
    bytes_accessed = (
        a_bd.size * 2 + x_flat.size * 2 + w.size * 2 + b2.size * 4 + TN * c_out * 4
    )
    cost = pl.CostEstimate(
        flops=flops, transcendentals=0, bytes_accessed=bytes_accessed
    )

    out_flat = pl.pallas_call(
        gcn_kernel,
        out_shape=jax.ShapeDtypeStruct((TN, c_out), jnp.float32),
        grid=grid,
        in_specs=[
            pl.BlockSpec((tile_rows, TN), lambda i: (i, 0)),  # kron(I_T, A) row tile
            pl.BlockSpec((TN, c_in), lambda i: (0, 0)),       # x slab (resident)
            pl.BlockSpec((c_in, c_out), lambda i: (0, 0)),    # weight (resident)
            pl.BlockSpec((1, c_out), lambda i: (0, 0)),       # bias (resident)
        ],
        out_specs=pl.BlockSpec((tile_rows, c_out), lambda i: (i, 0)),
        compiler_params=pltpu.CompilerParams(
            dimension_semantics=("parallel",),
            # Tile footprint is ~hundreds of KiB double-buffered; 8 MiB leaves ample
            # headroom for compiler scratch while staying far under v7x's 64 MiB.
            vmem_limit_bytes=8 * 1024 * 1024,
        ),
        cost_estimate=cost,
    )(a_bd, x_flat, w, b2)

    # (T*N, C_out) row-major is the same flat buffer as the PyTorch (T, N, C_out)
    # tensor, so the module's raw reshape to (N, C_out, T) is reproduced exactly.
    return out_flat.reshape(num_nodes, c_out, T)


def reference_forward(adjacency, input_feature, num_cnn_feature, weight, bias):
    # Pure-JAX f32 reference matching the PyTorch module line by line.
    num_nodes = adjacency.shape[0]
    c_in, c_out = weight.shape
    x = input_feature.reshape(num_cnn_feature, num_nodes, c_in)
    support = jnp.matmul(x, weight)           # (T, N, C_out)
    output = jnp.matmul(adjacency, support)   # adjacency broadcasts over T
    output = output + bias
    return output.reshape(num_nodes, c_out, num_cnn_feature)


def reference_forward_bf16_path(adjacency, input_feature, num_cnn_feature, weight, bias):
    # Mirrors the kernel's numerics exactly (bf16 operands, f32 accumulation,
    # bf16-rounded intermediate, A-first ordering) so a TIGHT tolerance check
    # validates the kernel without bf16 rounding masking real bugs.
    f32, bf16 = jnp.float32, jnp.bfloat16
    num_nodes = adjacency.shape[0]
    c_in, c_out = weight.shape
    T = int(num_cnn_feature)
    a = adjacency.astype(bf16).astype(f32)
    x = input_feature.reshape(T, num_nodes, c_in).astype(bf16).astype(f32)
    w = weight.astype(bf16).astype(f32)
    agg = jnp.einsum("ij,tjc->tic", a, x)                 # f32 accumulation
    agg = agg.astype(bf16).astype(f32)                    # kernel rounds intermediate
    out = jnp.einsum("tnc,cd->tnd", agg, w) + bias.astype(f32)
    return out.reshape(num_nodes, c_out, T)


if __name__ == "__main__":
    # Small shapes consistent with the module (T*N = 128 -> one lane-full contraction).
    num_nodes = 8          # graph nodes
    input_dim = 16         # input node features
    output_dim = 128       # output node features (lane-dense on TPU)
    num_cnn_feature = 16   # sequence-length dimension

    key = jax.random.PRNGKey(0)
    k_adj, k_x, k_w, k_b = jax.random.split(key, 4)

    # Deterministic symmetrically-normalized adjacency with self loops.
    a = (jax.random.uniform(k_adj, (num_nodes, num_nodes)) > 0.5).astype(jnp.float32)
    a = jnp.maximum(a, a.T)
    a = jnp.maximum(a, jnp.eye(num_nodes, dtype=jnp.float32))
    d_inv_sqrt = jax.lax.rsqrt(a.sum(axis=1))
    adjacency = a * d_inv_sqrt[:, None] * d_inv_sqrt[None, :]

    input_feature = jax.random.normal(
        k_x, (num_cnn_feature, num_nodes, input_dim), dtype=jnp.float32
    )

    # kaiming_uniform-style weight; nonzero bias to exercise the fused bias add
    # (the module's reset_parameters zeros the bias, but any value is valid).
    bound = (6.0 / input_dim) ** 0.5
    weight = jax.random.uniform(
        k_w, (input_dim, output_dim), jnp.float32, -bound, bound
    )
    bias = 0.1 * jax.random.normal(k_b, (output_dim,), dtype=jnp.float32)

    out = gcn_forward(adjacency, input_feature, num_cnn_feature, weight, bias)
    out = jax.block_until_ready(out)

    # Tight check: same numerics as the kernel (catches indexing/layout/math bugs).
    ref_bf16 = reference_forward_bf16_path(
        adjacency, input_feature, num_cnn_feature, weight, bias
    )
    assert out.shape == ref_bf16.shape, (out.shape, ref_bf16.shape)
    assert jnp.allclose(out, ref_bf16, atol=1e-3, rtol=1e-3), float(
        jnp.max(jnp.abs(out - ref_bf16))
    )

    # Loose check: exact f32 module semantics (tolerance only covers the deliberate
    # bf16 operand cast at the pallas_call boundary).
    ref_f32 = reference_forward(adjacency, input_feature, num_cnn_feature, weight, bias)
    assert jnp.allclose(out, ref_f32, atol=5e-2, rtol=2e-2), float(
        jnp.max(jnp.abs(out - ref_f32))
    )

    print("KERNEL_OK")
</pallas_src>

<mosaic_0001>
module attributes {stable_mosaic.version = 11 : i64} {
  func.func @gcn_kernel(%arg0: i32, %arg1: memref<64x128xbf16, #tpu.memory_space<vmem>>, %arg2: memref<128x16xbf16, #tpu.memory_space<vmem>>, %arg3: memref<16x128xbf16, #tpu.memory_space<vmem>>, %arg4: memref<1x128xf32, #tpu.memory_space<vmem>>, %arg5: memref<64x128xf32, #tpu.memory_space<vmem>>) attributes {dimension_semantics = [#tpu.dimension_semantics<parallel>], iteration_bounds = array<i64: 2>, scalar_prefetch = 0 : i64, scratch_operands = 0 : i64, tpu.core_type = #tpu.core_type<tc>, window_params = [{transform_indices = @transform_0, window_bounds = array<i64: 64, 128>}, {pipeline_mode = #tpu.pipeline_mode<synchronous>, transform_indices = @transform_1, window_bounds = array<i64: 128, 16>}, {pipeline_mode = #tpu.pipeline_mode<synchronous>, transform_indices = @transform_2, window_bounds = array<i64: 16, 128>}, {pipeline_mode = #tpu.pipeline_mode<synchronous>, transform_indices = @transform_3, window_bounds = array<i64: 1, 128>}, {transform_indices = @transform_4, window_bounds = array<i64: 64, 128>}]} {
    %c0 = arith.constant 0 : index
    %c0_0 = arith.constant 0 : index
    %0 = vector.load %arg1[%c0, %c0_0] : memref<64x128xbf16, #tpu.memory_space<vmem>>, vector<64x128xbf16>
    %c0_1 = arith.constant 0 : index
    %c0_2 = arith.constant 0 : index
    %1 = vector.load %arg2[%c0_1, %c0_2] : memref<128x16xbf16, #tpu.memory_space<vmem>>, vector<128x16xbf16>
    %cst = arith.constant dense<0.000000e+00> : vector<64x16xf32>
    %2 = tpu.matmul %0, %1, %cst {dimension_numbers = #tpu.dot_dimension_numbers<[1], [0], [0], [1], [0, 0, 1, 1], [], []>} : vector<64x128xbf16>, vector<128x16xbf16>, vector<64x16xf32> -> vector<64x16xf32>
    %3 = arith.truncf %2 : vector<64x16xf32> to vector<64x16xbf16>
    %c0_3 = arith.constant 0 : index
    %c0_4 = arith.constant 0 : index
    %4 = vector.load %arg3[%c0_3, %c0_4] : memref<16x128xbf16, #tpu.memory_space<vmem>>, vector<16x128xbf16>
    %cst_5 = arith.constant dense<0.000000e+00> : vector<64x128xf32>
    %5 = tpu.matmul %3, %4, %cst_5 {dimension_numbers = #tpu.dot_dimension_numbers<[1], [0], [0], [1], [0, 0, 1, 1], [], []>} : vector<64x16xbf16>, vector<16x128xbf16>, vector<64x128xf32> -> vector<64x128xf32>
    %c0_6 = arith.constant 0 : index
    %c0_7 = arith.constant 0 : index
    %6 = vector.load %arg4[%c0_6, %c0_7] : memref<1x128xf32, #tpu.memory_space<vmem>>, vector<1x128xf32>
    %7 = vector.broadcast %6 : vector<1x128xf32> to vector<64x128xf32>
    %8 = arith.addf %5, %7 : vector<64x128xf32>
    %c0_8 = arith.constant 0 : index
    %c0_9 = arith.constant 0 : index
    %9 = vector.load %arg5[%c0_8, %c0_9] : memref<64x128xf32, #tpu.memory_space<vmem>>, vector<64x128xf32>
    tpu.vector_store %arg5[%c0_8, %c0_9], %8 {strides = array<i32>} : memref<64x128xf32, #tpu.memory_space<vmem>>, vector<64x128xf32>,
    return
  }
  func.func @transform_0(%arg0: i32) -> (i32, i32) {
    %c0_i32 = arith.constant 0 : i32
    %c0_i32_0 = arith.constant 0 : i32
    return %arg0, %c0_i32 : i32, i32
  }
  func.func @transform_1(%arg0: i32) -> (i32, i32) {
    %c0_i32 = arith.constant 0 : i32
    %c0_i32_0 = arith.constant 0 : i32
    %c0_i32_1 = arith.constant 0 : i32
    return %c0_i32, %c0_i32_0 : i32, i32
  }
  func.func @transform_2(%arg0: i32) -> (i32, i32) {
    %c0_i32 = arith.constant 0 : i32
    %c0_i32_0 = arith.constant 0 : i32
    %c0_i32_1 = arith.constant 0 : i32
    return %c0_i32, %c0_i32_0 : i32, i32
  }
  func.func @transform_3(%arg0: i32) -> (i32, i32) {
    %c0_i32 = arith.constant 0 : i32
    %c0_i32_0 = arith.constant 0 : i32
    %c0_i32_1 = arith.constant 0 : i32
    return %c0_i32, %c0_i32_0 : i32, i32
  }
  func.func @transform_4(%arg0: i32) -> (i32, i32) {
    %c0_i32 = arith.constant 0 : i32
    %c0_i32_0 = arith.constant 0 : i32
    return %arg0, %c0_i32 : i32, i32
  }
}

</mosaic_0001>

<llo_original>
// kernel: tpu_custom_call.1
$region0: #{tpu_custom_call.1}
  #allocation0 [shape = 'u32[]', space=smem, size = 0x4, offset = 0x4, fixed_abs, tag = 'smem constant byte address 0x4 - core index']
  #allocation1 [shape = 'u32[144,128]{1,0:T(1,128)}', space=vmem, size = 0x12000, scoped, tag = 'internal scratch']
  %s0 = inlined_call_operand.vmem [shape: bf16[128,128], index: 0, kind: input, shape index: {}]
  %s1 = inlined_call_operand.vmem [shape: bf16[128,16], index: 1, kind: input, shape index: {}]
  %s2 = inlined_call_operand.vmem [shape: bf16[16,128], index: 2, kind: input, shape index: {}]
  %s3 = inlined_call_operand.vmem [shape: f32[1,128], index: 3, kind: input, shape index: {}]
  %s4 = inlined_call_operand.hbm [shape: f32[128,128], index: 4, kind: output, shape index: {}]
  %s5 = sld [smem:[#allocation0]]
  $region49: #{tpu_custom_call.1} parent=0
    _
  %s7 = ssub.s32 1, %s5
  %s8 = scalar_select 0, %s7, %s5
  $region1: #{tpu_custom_call.1} parent=0
    #allocation2 [shape = 'u8[65536]{0}', space=vmem, size = 0x10000, scoped, tag = 'output window, operand 0']
    #allocation3 [shape = 's32[2]{0}', space=sflag, size = 0x8, scoped, tag = 'scoped memory for tpu_custom_call.1']
    %9 = vsyncpa [#allocation3], 0
    %s10 = scalar_lea.sflag [#allocation3], 1
    %11 = vsyncpa %s10, 0
    loop: start=0, step=1, limit=4
    $region2: #{tpu_custom_call.1} parent=1 // loop_pre_header
      _
    $region3: #{tpu_custom_call.1} parent=1 // loop_header
      %s13 = sphi 0, %s17
      %p14 = scmp.ge.s32.totalorder %s13, 4
      %s23 = sphi 0, %s25
      %s26 = sphi 0, %s23
      %s27 = sphi 0, %s26
      %s43 = sphi 0, %s27
      %s47 = sphi 0, %s47
      %s49 = sphi 0, %s47
      %s50 = sphi 0, %s49
      %s64 = sphi 0, %s50
      %s68 = sphi 0, %s68
      %s70 = sphi 0, %s68
      %s71 = sphi 0, %s70
      %s85 = sphi 0, %s71
      %s89 = sphi 0, %s89
      %s91 = sphi 0, %s89
      %s92 = sphi 0, %s91
      %s106 = sphi 0, %s92
      %s112 = sphi 0, %s114
      %s115 = sphi 0, %s112
      %s116 = sphi 0, %s115
      %s132 = sphi 0, %s116
    $region4: #{tpu_custom_call.1} parent=1 // loop_header_branch
      %16 = sbr.rel (%p14) target = $region8
    $region5: #{tpu_custom_call.1} parent=1 // loop_body
      %s18 = ssub.s32 %s13, 1
      %s19 = ssub.s32 %s13, 2
      %s20 = sadd.s32 %s13, 1
      %s21 = ssub.s32 %s13, %s20
      %p22 = scmp.eq.s32.totalorder %s21, 0
      %s24 = sadd.s32 %s23, 1
      %s25 = scalar_select %p22, %s23, %s24
      %p28 = pneg %p22
      %p29 = scmp.eq.s32.totalorder %s13, 1
      %p30 = por %p28, %p29
      %p31 = scmp.ne.s32.totalorder %s23, %s26
      %p32 = scmp.eq.s32.totalorder %s13, 0
      %p33 = por %p31, %p32
      %p34 = scmp.ne.s32.totalorder %s23, %s26
      %p35 = scmp.eq.s32.totalorder %s18, 1
      %p36 = por %p34, %p35
      %p37 = scmp.ne.s32.totalorder %s26, %s27
      %p38 = scmp.eq.s32.totalorder %s18, 0
      %p39 = por %p37, %p38
      %p40 = scmp.ne.s32.totalorder %s26, %s27
      %p41 = scmp.eq.s32.totalorder %s19, 1
      %p42 = por %p40, %p41
      %p44 = scmp.ne.s32.totalorder %s27, %s43
      %p45 = scmp.eq.s32.totalorder %s19, 0
      %p46 = por %p44, %p45
      %s48 = sadd.s32 %s47, 1
      %p51 = scmp.eq.s32.totalorder %s13, 1
      %p52 = scmp.ne.s32.totalorder %s47, %s49
      %p53 = scmp.eq.s32.totalorder %s13, 0
      %p54 = por %p52, %p53
      %p55 = scmp.ne.s32.totalorder %s47, %s49
      %p56 = scmp.eq.s32.totalorder %s18, 1
      %p57 = por %p55, %p56
      %p58 = scmp.ne.s32.totalorder %s49, %s50
      %p59 = scmp.eq.s32.totalorder %s18, 0
      %p60 = por %p58, %p59
      %p61 = scmp.ne.s32.totalorder %s49, %s50
      %p62 = scmp.eq.s32.totalorder %s19, 1
      %p63 = por %p61, %p62
      %p65 = scmp.ne.s32.totalorder %s50, %s64
      %p66 = scmp.eq.s32.totalorder %s19, 0
      %p67 = por %p65, %p66
      %s69 = sadd.s32 %s68, 1
      %p72 = scmp.eq.s32.totalorder %s13, 1
      %p73 = scmp.ne.s32.totalorder %s68, %s70
      %p74 = scmp.eq.s32.totalorder %s13, 0
      %p75 = por %p73, %p74
      %p76 = scmp.ne.s32.totalorder %s68, %s70
      %p77 = scmp.eq.s32.totalorder %s18, 1
      %p78 = por %p76, %p77
      %p79 = scmp.ne.s32.totalorder %s70, %s71
      %p80 = scmp.eq.s32.totalorder %s18, 0
      %p81 = por %p79, %p80
      %p82 = scmp.ne.s32.totalorder %s70, %s71
      %p83 = scmp.eq.s32.totalorder %s19, 1
      %p84 = por %p82, %p83
      %p86 = scmp.ne.s32.totalorder %s71, %s85
      %p87 = scmp.eq.s32.totalorder %s19, 0
      %p88 = por %p86, %p87
      %s90 = sadd.s32 %s89, 1
      %p93 = scmp.eq.s32.totalorder %s13, 1
      %p94 = scmp.ne.s32.totalorder %s89, %s91
      %p95 = scmp.eq.s32.totalorder %s13, 0
      %p96 = por %p94, %p95
      %p97 = scmp.ne.s32.totalorder %s89, %s91
      %p98 = scmp.eq.s32.totalorder %s18, 1
      %p99 = por %p97, %p98
      %p100 = scmp.ne.s32.totalorder %s91, %s92
      %p101 = scmp.eq.s32.totalorder %s18, 0
      %p102 = por %p100, %p101
      %p103 = scmp.ne.s32.totalorder %s91, %s92
      %p104 = scmp.eq.s32.totalorder %s19, 1
      %p105 = por %p103, %p104
      %p107 = scmp.ne.s32.totalorder %s92, %s106
      %p108 = scmp.eq.s32.totalorder %s19, 0
      %p109 = por %p107, %p108
      %s110 = ssub.s32 %s13, %s20
      %p111 = scmp.eq.s32.totalorder %s110, 0
      %s113 = sadd.s32 %s112, 1
      %s114 = scalar_select %p111, %s112, %s113
      %p117 = pneg %p111
      %p118 = scmp.eq.s32.totalorder %s13, 1
      %p119 = por %p117, %p118
      %p120 = scmp.ne.s32.totalorder %s112, %s115
      %p121 = scmp.eq.s32.totalorder %s13, 0
      %p122 = por %p120, %p121
      %p123 = scmp.ne.s32.totalorder %s112, %s115
      %p124 = scmp.eq.s32.totalorder %s18, 1
      %p125 = por %p123, %p124
      %p126 = scmp.ne.s32.totalorder %s115, %s116
      %p127 = scmp.eq.s32.totalorder %s18, 0
      %p128 = por %p126, %p127
      %p129 = scmp.ne.s32.totalorder %s115, %s116
      %p130 = scmp.eq.s32.totalorder %s19, 1
      %p131 = por %p129, %p130
      %p133 = scmp.ne.s32.totalorder %s116, %s132
      %p134 = scmp.eq.s32.totalorder %s19, 0
      %p135 = por %p133, %p134
      %p136 = scmp.le.s32.totalorder 1, %s13
      %p137 = scmp.lt.s32.totalorder %s13, 3
      %p138 = pnand %p136, %p137
      %p139 = pneg %p138
      // Predicated region
      $region9: #{tpu_custom_call.1} parent=5 // pred_check
        _
      $region10: #{tpu_custom_call.1} parent=5 // pred_check_branch
        %141 = sbr.rel (%p138) target = $region12
      $region11: #{tpu_custom_call.1} parent=5 // pred_region
        %s142 = ssub.s32 %s13, 1
        // Predicated region
        $region13: #{tpu_custom_call.1} parent=11 // pred_check
          %p143 = pneg %p60
        $region14: #{tpu_custom_call.1} parent=11 // pred_check_branch
          %145 = sbr.rel (%p143) target = $region16
        $region15: #{tpu_custom_call.1} parent=11 // pred_region
          _
        $region16: #{tpu_custom_call.1} parent=11 // pred_fallthru
          _
        // Predicated region
        $region17: #{tpu_custom_call.1} parent=11 // pred_check
          %p146 = pneg %p81
        $region18: #{tpu_custom_call.1} parent=11 // pred_check_branch
          %148 = sbr.rel (%p146) target = $region20
        $region19: #{tpu_custom_call.1} parent=11 // pred_region
          _
        $region20: #{tpu_custom_call.1} parent=11 // pred_fallthru
          _
        // Predicated region
        $region21: #{tpu_custom_call.1} parent=11 // pred_check
          %p149 = pneg %p102
        $region22: #{tpu_custom_call.1} parent=11 // pred_check_branch
          %151 = sbr.rel (%p149) target = $region24
        $region23: #{tpu_custom_call.1} parent=11 // pred_region
          _
        $region24: #{tpu_custom_call.1} parent=11 // pred_fallthru
          _
      $region12: #{tpu_custom_call.1} parent=5 // pred_fallthru
        _
      %p152 = scmp.lt.s32.totalorder %s13, 2
      // Predicated region
      $region25: #{tpu_custom_call.1} parent=5 // pred_check
        %p153 = pneg %p152
      $region26: #{tpu_custom_call.1} parent=5 // pred_check_branch
        %155 = sbr.rel (%p153) target = $region28
      $region27: #{tpu_custom_call.1} parent=5 // pred_region
        // Predicated region
        $region29: #{tpu_custom_call.1} parent=27 // pred_check
          %p156 = pneg %p33
        $region30: #{tpu_custom_call.1} parent=27 // pred_check_branch
          %158 = sbr.rel (%p156) target = $region32
        $region31: #{tpu_custom_call.1} parent=27 // pred_region
          %s159 = smul.u32 8, %s13
          %p160 = scmp.lt.s32.totalorder %s159, 15
          %s161 = scalar_select %p160, %s159, 15
          %s162 = smul.addr %s161, 4
          %s163 = scalar_lea.vmem %s0, %s162
          %s164 = smul.u32 8, %s13
        $region32: #{tpu_custom_call.1} parent=27 // pred_fallthru
          _
      $region28: #{tpu_custom_call.1} parent=5 // pred_fallthru
        _
      %p165 = scmp.le.s32.totalorder 1, %s13
      %p166 = scmp.lt.s32.totalorder %s13, 3
      %p167 = pnand %p165, %p166
      %p168 = pneg %p167
      // Predicated region
      $region33: #{tpu_custom_call.1} parent=5 // pred_check
        _
      $region34: #{tpu_custom_call.1} parent=5 // pred_check_branch
        %170 = sbr.rel (%p167) target = $region36
      $region35: #{tpu_custom_call.1} parent=5 // pred_region
        %s171 = ssub.s32 %s13, 1
        %s172 = smul.u32 8, %s18
        %p173 = scmp.lt.s32.totalorder %s172, 15
        %s174 = scalar_select %p173, %s172, 15
        %s175 = smul.addr %s174, 4
        %s176 = scalar_lea.vmem %s0, %s175
        %p177 = pneg %p39
        %p178 = pneg %p36
        %p179 = pneg %p60
        %p180 = pneg %p57
        %p181 = pneg %p81
        %p182 = pneg %p78
        %p183 = pneg %p102
        %p184 = pneg %p99
        %p185 = pneg %p128
        %p186 = pneg %p125
        %s187 = sand.u32 %s115, 1
        %s188 = scalar_lea.sflag [#allocation3], %s187
        %s189 = sand.u32 %s115, 1
        %s190 = smul.addr %s189, 64
        %s191 = scalar_lea.vmem [#allocation2], %s190
        %s192 = smul.u32 8, %s18
        %p193 = scmp.lt.s32.totalorder %s192, 15
        %s194 = scalar_select %p193, %s192, 15
        %s195 = smul.addr %s194, 4
        %s196 = scalar_lea.vmem %s0, %s195
        %s197 = smul.u32 8, %s18
        %s198 = smul.u32 8, %s18
        %v200 = vld [vmem:[%s196] sm:$0xf]
        %v201 = vld [vmem:[%s196 + $0x4] sm:$0xf]
        %v202 = vld [vmem:[%s196 + $0x8] sm:$0xf]
        %v203 = vld [vmem:[%s196 + $0xc] sm:$0xf]
        %v204 = vld [vmem:[%s196 + $0x10] sm:$0xf]
        %v205 = vld [vmem:[%s196 + $0x14] sm:$0xf]
        %v206 = vld [vmem:[%s196 + $0x18] sm:$0xf]
        %v207 = vld [vmem:[%s196 + $0x1c] sm:$0xf]
        %v208 = vld [vmem:[%s1] sm:$0xf]
        %v209 = vld [vmem:[%s1 + $0x4] sm:$0xf]
        %v210 = vld [vmem:[%s1 + $0x8] sm:$0xf]
        %v211 = vld [vmem:[%s1 + $0xc] sm:$0xf]
        %v212 = vld [vmem:[%s1 + $0x10] sm:$0xf]
        %v213 = vld [vmem:[%s1 + $0x14] sm:$0xf]
        %v214 = vld [vmem:[%s1 + $0x18] sm:$0xf]
        %v215 = vld [vmem:[%s1 + $0x1c] sm:$0xf]
        %v216 = vld [vmem:[%s1 + $0x20] sm:$0xf]
        %v217 = vld [vmem:[%s1 + $0x24] sm:$0xf]
        %v218 = vld [vmem:[%s1 + $0x28] sm:$0xf]
        %v219 = vld [vmem:[%s1 + $0x2c] sm:$0xf]
        %v220 = vld [vmem:[%s1 + $0x30] sm:$0xf]
        %v221 = vld [vmem:[%s1 + $0x34] sm:$0xf]
        %v222 = vld [vmem:[%s1 + $0x38] sm:$0xf]
        %v223 = vld [vmem:[%s1 + $0x3c] sm:$0xf]
        %v232 = vunpack.c.l.b16 %v200
        %v233 = vunpack.c.l.b16 %v201
        %v234 = vunpack.c.l.b16 %v202
        %v235 = vunpack.c.l.b16 %v203
        %v236 = vunpack.c.l.b16 %v204
        %v237 = vunpack.c.l.b16 %v205
        %v238 = vunpack.c.l.b16 %v206
        %v239 = vunpack.c.l.b16 %v207
        %v240 = vpack.c.b16 %v233, %v232
        %v241 = vpack.c.b16 %v235, %v234
        %v242 = vpack.c.b16 %v237, %v236
        %v243 = vpack.c.b16 %v239, %v238
        %v264 = vunpack.c.l.b16 %v208
        %v265 = vunpack.c.l.b16 %v209
        %v266 = vunpack.c.l.b16 %v210
        %v267 = vunpack.c.l.b16 %v211
        %v268 = vunpack.c.l.b16 %v212
        %v269 = vunpack.c.l.b16 %v213
        %v270 = vunpack.c.l.b16 %v214
        %v271 = vunpack.c.l.b16 %v215
        %v272 = vunpack.c.l.b16 %v216
        %v273 = vunpack.c.l.b16 %v217
        %v274 = vunpack.c.l.b16 %v218
        %v275 = vunpack.c.l.b16 %v219
        %v276 = vunpack.c.l.b16 %v220
        %v277 = vunpack.c.l.b16 %v221
        %v278 = vunpack.c.l.b16 %v222
        %v279 = vunpack.c.l.b16 %v223
        %v280 = vpack.c.b16 %v265, %v264
        %v281 = vpack.c.b16 %v267, %v266
        %v282 = vpack.c.b16 %v269, %v268
        %v283 = vpack.c.b16 %v271, %v270
        %v284 = vpack.c.b16 %v273, %v272
        %v285 = vpack.c.b16 %v275, %v274
        %v286 = vpack.c.b16 %v277, %v276
        %v287 = vpack.c.b16 %v279, %v278
        %296 = vmatprep.subr.bf16.mxu0 0
        %297 = vmatpush1.bf16.msra.mxu0 %v280
        %298 = vmatprep.subr.bf16.mxu0 0
        %299 = vmatpush1.bf16.msra.mxu0 %v281
        %300 = vmatprep.subr.bf16.mxu0 0
        %301 = vmatpush1.bf16.msra.mxu0 %v282
        %302 = vmatprep.subr.bf16.mxu0 0
        %303 = vmatpush1.bf16.msra.mxu0 %v283
        %304 = vmatprep.subr.bf16.mxu0 0
        %305 = vmatpush1.bf16.msra.mxu0 %v284
        %306 = vmatprep.subr.bf16.mxu0 0
        %307 = vmatpush1.bf16.msra.mxu0 %v285
        %308 = vmatprep.subr.bf16.mxu0 0
        %309 = vmatpush1.bf16.msra.mxu0 %v286
        %310 = vmatprep.subr.bf16.mxu0 0
        %311 = vmatpush1.bf16.msra.mxu0 %v287
        %312 = vmatprep.subr.bf16.mxu0 0
        %313 = vmatpush1.bf16.msra.mxu0 0
        %314 = vmatprep.subr.bf16.mxu0 0
        %315 = vmatpush1.bf16.msra.mxu0 0
        %316 = vmatprep.subr.bf16.mxu0 0
        %317 = vmatpush1.bf16.msra.mxu0 0
        %318 = vmatprep.subr.bf16.mxu0 0
        %319 = vmatpush1.bf16.msra.mxu0 0
        %320 = vmatprep.subr.bf16.mxu0 0
        %321 = vmatpush1.bf16.msra.mxu0 0
        %322 = vmatprep.subr.bf16.mxu0 0
        %323 = vmatpush1.bf16.msra.mxu0 0
        %324 = vmatprep.subr.bf16.mxu0 0
        %325 = vmatpush1.bf16.msra.mxu0 0
        %326 = vmatprep.subr.bf16.mxu0 0
        %327 = vmatpush1.bf16.msra.mxu0 0
        %328 = vmatprep.mubr.bf16.mxu0 0
        %329 = vmatmul.mubr.bf16.gmra.mrb[0].mxu0 %v240
        %v330 = vpop.f32.mrb[0].mxu0
        %v331 = vadd.f32 0.0, %v330
        %v332 = vpop.f32.mrb[0].mxu0
        %v333 = vpop.f32.mrb[0].mxu0
        %v334 = vadd.f32 0.0, %v333
        %v335 = vpop.f32.mrb[0].mxu0
        %336 = vmatprep.mubr.bf16.mxu0 0
        %337 = vmatmul.mubr.bf16.gmra.mrb[0].mxu0 %v241
        %v338 = vpop.f32.mrb[0].mxu0
        %v339 = vadd.f32 0.0, %v338
        %v340 = vpop.f32.mrb[0].mxu0
        %v341 = vpop.f32.mrb[0].mxu0
        %v342 = vadd.f32 0.0, %v341
        %v343 = vpop.f32.mrb[0].mxu0
        %344 = vmatprep.mubr.bf16.mxu0 0
        %345 = vmatmul.mubr.bf16.gmra.mrb[0].mxu0 %v242
        %v346 = vpop.f32.mrb[0].mxu0
        %v347 = vadd.f32 0.0, %v346
        %v348 = vpop.f32.mrb[0].mxu0
        %v349 = vpop.f32.mrb[0].mxu0
        %v350 = vadd.f32 0.0, %v349
        %v351 = vpop.f32.mrb[0].mxu0
        %352 = vmatprep.mubr.bf16.mxu0 0
        %353 = vmatmul.mubr.bf16.gmra.mrb[0].mxu0 %v243
        %v354 = vpop.f32.mrb[0].mxu0
        %v355 = vadd.f32 0.0, %v354
        %v356 = vpop.f32.mrb[0].mxu0
        %v357 = vpop.f32.mrb[0].mxu0
        %v358 = vadd.f32 0.0, %v357
        %v359 = vpop.f32.mrb[0].mxu0
        %360 = vdwg.mxu0
        %v361 = vpack.c.bf16 %v334, %v331
        %v362 = vpack.c.bf16 %v342, %v339
        %v363 = vpack.c.bf16 %v350, %v347
        %v364 = vpack.c.bf16 %v358, %v355
        %v365 = vld [vmem:[%s2] sm:$0xf]
        %v366 = vld [vmem:[%s2 + $0x4] sm:$0xf]
        %v367 = vld [vmem:[%s3] sm:$0x1]
        %v369 = vlaneseq
        %v370 = vshrl.u32 %v369, 7
        %v371 = vsub.s32 0, %v370
        %v372 = vrot.slane %v367, %v371
        %v376 = vunpack.c.l.b16 %v365
        %v377 = vunpack.c.l.b16 %v366
        %v378 = vpack.c.b16 %v377, %v376
        %vm380 = vcmask 130048
        %v382 = vsel %vm380, %v361, 0
        %v385 = vsel %vm380, %v362, 0
        %v388 = vsel %vm380, %v363, 0
        %v391 = vsel %vm380, %v364, 0
        %393 = vmatprep.subr.bf16.mxu0 0
        %394 = vmatpush1.bf16.msra.mxu0 %v378
        %395 = vmatprep.subr.bf16.mxu0 0
        %396 = vmatpush1.bf16.msra.mxu0 0
        %397 = vmatprep.subr.bf16.mxu0 0
        %398 = vmatpush1.bf16.msra.mxu0 0
        %399 = vmatprep.subr.bf16.mxu0 0
        %400 = vmatpush1.bf16.msra.mxu0 0
        %401 = vmatprep.subr.bf16.mxu0 0
        %402 = vmatpush1.bf16.msra.mxu0 0
        %403 = vmatprep.subr.bf16.mxu0 0
        %404 = vmatpush1.bf16.msra.mxu0 0
        %405 = vmatprep.subr.bf16.mxu0 0
        %406 = vmatpush1.bf16.msra.mxu0 0
        %407 = vmatprep.subr.bf16.mxu0 0
        %408 = vmatpush1.bf16.msra.mxu0 0
        %409 = vmatprep.subr.bf16.mxu0 0
        %410 = vmatpush1.bf16.msra.mxu0 0
        %411 = vmatprep.subr.bf16.mxu0 0
        %412 = vmatpush1.bf16.msra.mxu0 0
        %413 = vmatprep.subr.bf16.mxu0 0
        %414 = vmatpush1.bf16.msra.mxu0 0
        %415 = vmatprep.subr.bf16.mxu0 0
        %416 = vmatpush1.bf16.msra.mxu0 0
        %417 = vmatprep.subr.bf16.mxu0 0
        %418 = vmatpush1.bf16.msra.mxu0 0
        %419 = vmatprep.subr.bf16.mxu0 0
        %420 = vmatpush1.bf16.msra.mxu0 0
        %421 = vmatprep.subr.bf16.mxu0 0
        %422 = vmatpush1.bf16.msra.mxu0 0
        %423 = vmatprep.subr.bf16.mxu0 0
        %424 = vmatpush1.bf16.msra.mxu0 0
        %425 = vmatprep.mubr.bf16.mxu0 0
        %426 = vmatmul.mubr.bf16.gmra.mrb[0].mxu0 %v382
        %v427 = vpop.f32.mrb[0].mxu0
        %v428 = vadd.f32 %v372, %v427
        %v429 = vpop.f32.mrb[0].mxu0
        %v430 = vpop.f32.mrb[0].mxu0
        %v431 = vadd.f32 %v372, %v430
        %v432 = vpop.f32.mrb[0].mxu0
        %433 = vmatprep.mubr.bf16.mxu0 0
        %434 = vmatmul.mubr.bf16.gmra.mrb[0].mxu0 %v385
        %v435 = vpop.f32.mrb[0].mxu0
        %v436 = vadd.f32 %v372, %v435
        %v437 = vpop.f32.mrb[0].mxu0
        %v438 = vpop.f32.mrb[0].mxu0
        %v439 = vadd.f32 %v372, %v438
        %v440 = vpop.f32.mrb[0].mxu0
        %441 = vmatprep.mubr.bf16.mxu0 0
        %442 = vmatmul.mubr.bf16.gmra.mrb[0].mxu0 %v388
        %v443 = vpop.f32.mrb[0].mxu0
        %v444 = vadd.f32 %v372, %v443
        %v445 = vpop.f32.mrb[0].mxu0
        %v446 = vpop.f32.mrb[0].mxu0
        %v447 = vadd.f32 %v372, %v446
        %v448 = vpop.f32.mrb[0].mxu0
        %449 = vmatprep.mubr.bf16.mxu0 0
        %450 = vmatmul.mubr.bf16.gmra.mrb[0].mxu0 %v391
        %v451 = vpop.f32.mrb[0].mxu0
        %v452 = vadd.f32 %v372, %v451
        %v453 = vpop.f32.mrb[0].mxu0
        %v454 = vpop.f32.mrb[0].mxu0
        %v455 = vadd.f32 %v372, %v454
        %v456 = vpop.f32.mrb[0].mxu0
        %457 = vdwg.mxu0
        %458 = vst [vmem:[%s191] sm:$0xff] %v428
        %459 = vst [vmem:[%s191 + $0x8] sm:$0xff] %v431
        %460 = vst [vmem:[%s191 + $0x10] sm:$0xff] %v436
        %461 = vst [vmem:[%s191 + $0x18] sm:$0xff] %v439
        %462 = vst [vmem:[%s191 + $0x20] sm:$0xff] %v444
        %463 = vst [vmem:[%s191 + $0x28] sm:$0xff] %v447
        %464 = vst [vmem:[%s191 + $0x30] sm:$0xff] %v452
        %465 = vst [vmem:[%s191 + $0x38] sm:$0xff] %v455
        %s466 = sand.u32 %s115, 1
        %s467 = scalar_lea.sflag [#allocation3], %s466
        %s468 = sand.u32 %s115, 1
        %s469 = smul.addr %s468, 64
        %s470 = scalar_lea.vmem [#allocation2], %s469
        // Predicated region
        $region37: #{tpu_custom_call.1} parent=35 // pred_check
          %p471 = pneg %p125
        $region38: #{tpu_custom_call.1} parent=35 // pred_check_branch
          %473 = sbr.rel (%p471) target = $region40
        $region39: #{tpu_custom_call.1} parent=35 // pred_region
          %s474 = smul.u32 8, %s18
          %s476 = ssub.s32 1024, 1024
          %477 = vsyncadd %s467, %s476
          %s478 = smul.addr %s474, 128
          %s479 = scalar_lea.hbm %s4, %s478
          %s480 = sshll.u32 %s470, 4
          %s481 = int_to_ptr.vmem [resolvable:$true] %s480
          %486 = dma.vmem_to_hbm [thread:$0]  %s481, 1024, %s479, %s467, 128, 128, 8
        $region40: #{tpu_custom_call.1} parent=35 // pred_fallthru
          _
      $region36: #{tpu_custom_call.1} parent=5 // pred_fallthru
        _
      %p487 = scmp.le.s32.totalorder 2, %s13
      // Predicated region
      $region41: #{tpu_custom_call.1} parent=5 // pred_check
        %p488 = pneg %p487
      $region42: #{tpu_custom_call.1} parent=5 // pred_check_branch
        %490 = sbr.rel (%p488) target = $region44
      $region43: #{tpu_custom_call.1} parent=5 // pred_region
        %s491 = ssub.s32 %s13, 2
        // Predicated region
        $region45: #{tpu_custom_call.1} parent=43 // pred_check
          %p492 = pneg %p131
        $region46: #{tpu_custom_call.1} parent=43 // pred_check_branch
          %494 = sbr.rel (%p492) target = $region48
        $region47: #{tpu_custom_call.1} parent=43 // pred_region
          %s495 = sand.u32 %s116, 1
          %s496 = scalar_lea.sflag [#allocation3], %s495
          %s497 = sand.u32 %s116, 1
          %s498 = smul.addr %s497, 64
          %s499 = scalar_lea.vmem [#allocation2], %s498
          %500 = dma.done %s496, 1024
        $region48: #{tpu_custom_call.1} parent=43 // pred_fallthru
          _
      $region44: #{tpu_custom_call.1} parent=5 // pred_fallthru
        _
    $region6: #{tpu_custom_call.1} parent=1 // loop_footer
      %s17 = sadd.s32 1, %s13
    $region7: #{tpu_custom_call.1} parent=1 // loop_footer_branch
      %12 = sbr.rel target = $region3
    $region8: #{tpu_custom_call.1} parent=1 // loop_exit
      _
    %501 = vsyncpa [#allocation3], 1
    %s502 = scalar_lea.sflag [#allocation3], 1
    %503 = vsyncpa %s502, 1

</llo_original>
